<compile_context>
chip_gen: v6e
topology: v6e:2x2x1
jax: 0.10.0
libtpu: 0.0.40
codegen_flags: <defaults>
</compile_context>

<pallas_src>
import functools

import jax
import jax.numpy as jnp
from jax.experimental import pallas as pl
from jax.experimental.pallas import tpu as pltpu


def gated_fusion_kernel(x_ref, wg_ref, e_ref, b_ref, out_ref, *, G, D):
    """One row tile.

    x_ref   : (tm, G*2D)  packed rows, row r = [cls_0|title_0|...|cls_{G-1}|title_{G-1}]
    wg_ref  : (G*2D, G)   block-diagonal gate weight, wg[g*2D + j, g] = w[j]
    e_ref   : (G, G*D)    0/1 expand matrix, e[g, g*D + k] = 1
    b_ref   : (1,)        gate bias (SMEM scalar)
    out_ref : (tm, G*D)   packed fused rows
    """
    f32 = jnp.float32
    x = x_ref[...].astype(f32)                                                # (tm, G*2D)

    # Segmented gate logits on the otherwise-idle MXU (one tiny matmul instead of
    # G cross-lane reductions).
    logits = jnp.dot(x, wg_ref[...], preferred_element_type=f32) + b_ref[0]   # (tm, G)
    gate = jax.nn.sigmoid(logits)                                             # EUP
    # Broadcast gate_g over its D-lane output segment (exact 0/1 expand matrix).
    gate_b = jnp.dot(gate, e_ref[...], preferred_element_type=f32)            # (tm, G*D)

    # Lane-compact cls / title: static slices + lane concat (XLU; hidden under DMA).
    cls_p = jnp.concatenate([x[:, 2 * D * g: 2 * D * g + D] for g in range(G)], axis=-1)
    tit_p = jnp.concatenate([x[:, 2 * D * g + D: 2 * D * (g + 1)] for g in range(G)], axis=-1)

    fused = tit_p + gate_b * (cls_p - tit_p)          # == g*cls + (1-g)*title
    out_ref[...] = fused.astype(out_ref.dtype)


def gated_fusion(feats, weight, bias, *, block_bytes=4 * 1024 * 1024):
    """feats: [B, L, 2, D]; weight: [1, 2D]; bias: [1] — matches nn.Linear(2D, 1)."""
    B, L, K, D = feats.shape
    assert K == 2
    assert weight.shape == (1, 2 * D) and bias.shape == (1,)
    M = B * L

    # Lane-dense packing factor: G original rows per kernel row so the output row is
    # G*D = 128 lanes (full vreg width).
    if D < 128 and 128 % D == 0 and M % (128 // D) == 0:
        G = 128 // D
    else:
        G = 1  # TODO(synk): when 128 % D != 0 we fall back to masked sub-128-lane stores.

    Mout = M // G
    Din = 2 * G * D          # packed input row width (lanes)
    Dout = G * D             # packed output row width (lanes)

    # Free, row-major reshape: packed row r holds [cls|title] of original rows rG..rG+G-1.
    x = feats.reshape(Mout, Din)

    # Block-diagonal gate weight + 0/1 expand matrix (tiny, stay resident in VMEM).
    w_col = weight.reshape(2 * D, 1).astype(jnp.float32)
    wg = jnp.kron(jnp.eye(G, dtype=jnp.float32), w_col)                              # (Din, G)
    e = jnp.kron(jnp.eye(G, dtype=jnp.float32), jnp.ones((1, D), jnp.float32))       # (G, Dout)
    b_smem = bias.reshape(1).astype(jnp.float32)

    # Row tile: ~block_bytes of input per grid step (MiB-scale amortizes the per-step
    # pipeline overhead; ~3x block_bytes double-buffered VMEM, well under 32 MiB).
    itemsize = jnp.dtype(feats.dtype).itemsize
    tm = max(8, (block_bytes // (Din * itemsize)) // 8 * 8)
    if tm >= Mout:
        tm = Mout                      # single block == full array (no ragged edge)
    grid = (pl.cdiv(Mout, tm),)        # ragged tail masked by Pallas — no jnp.pad HBM copy

    out = pl.pallas_call(
        functools.partial(gated_fusion_kernel, G=G, D=D),
        out_shape=jax.ShapeDtypeStruct((Mout, Dout), feats.dtype),
        grid_spec=pltpu.PrefetchScalarGridSpec(
            num_scalar_prefetch=0,
            grid=grid,
            in_specs=[
                pl.BlockSpec((tm, Din), lambda i: (i, 0)),           # x tiles (pipelined)
                pl.BlockSpec((Din, G), lambda i: (0, 0)),            # gate weight, resident
                pl.BlockSpec((G, Dout), lambda i: (0, 0)),           # expand matrix, resident
                pl.BlockSpec(memory_space=pltpu.MemorySpace.SMEM),   # scalar bias
            ],
            out_specs=pl.BlockSpec((tm, Dout), lambda i: (i, 0)),
        ),
        compiler_params=pltpu.CompilerParams(
            dimension_semantics=("parallel",),    # megacore-shardable row loop (v7x)
            vmem_limit_bytes=32 * 1024 * 1024,    # ~12 MiB used; safe on v5e/v6e/v7x
        ),
    )(x, wg, e, b_smem)

    return out.reshape(B, L, D)


def reference(feats, weight, bias):
    cls_emb = feats[:, :, 0, :]
    title_emb = feats[:, :, 1, :]
    cat = jnp.concatenate([cls_emb, title_emb], axis=-1)
    logit = jnp.einsum("bld,od->blo", cat, weight,
                       precision=jax.lax.Precision.HIGHEST) + bias
    g = jax.nn.sigmoid(logit)
    return g * cls_emb + (1.0 - g) * title_emb


if __name__ == "__main__":
    B, L, D = 2, 8, 32   # hidden_size = 32

    key = jax.random.PRNGKey(0)
    k_feats, k_w, k_b = jax.random.split(key, 3)

    feats = jax.random.normal(k_feats, (B, L, 2, D), dtype=jnp.float32)

    # Deterministic nn.Linear(2D, 1)-shaped params (uniform in +-1/sqrt(2D)).
    bound = 1.0 / (2 * D) ** 0.5
    weight = jax.random.uniform(k_w, (1, 2 * D), jnp.float32, -bound, bound)
    bias = jax.random.uniform(k_b, (1,), jnp.float32, -bound, bound)

    out = gated_fusion(feats, weight, bias)
    out = jax.block_until_ready(out)

    ref = reference(feats, weight, bias)
    assert out.shape == (B, L, D)
    assert jnp.allclose(out, ref, atol=1e-4, rtol=1e-4), "mismatch vs reference"

    print("KERNEL_OK")
</pallas_src>

<mosaic_0001>
module attributes {stable_mosaic.version = 11 : i64} {
  func.func @gated_fusion_kernel(%arg0: i32, %arg1: memref<4x256xf32, #tpu.memory_space<vmem>>, %arg2: memref<256x4xf32, #tpu.memory_space<vmem>>, %arg3: memref<4x128xf32, #tpu.memory_space<vmem>>, %arg4: memref<1xf32, #tpu.memory_space<smem>>, %arg5: memref<4x128xf32, #tpu.memory_space<vmem>>) attributes {dimension_semantics = [#tpu.dimension_semantics<parallel>], iteration_bounds = array<i64: 1>, scalar_prefetch = 0 : i64, scratch_operands = 0 : i64, tpu.core_type = #tpu.core_type<tc>, window_params = [{transform_indices = @transform_0, window_bounds = array<i64: 4, 256>}, {pipeline_mode = #tpu.pipeline_mode<synchronous>, transform_indices = @transform_1, window_bounds = array<i64: 256, 4>}, {pipeline_mode = #tpu.pipeline_mode<synchronous>, transform_indices = @transform_2, window_bounds = array<i64: 4, 128>}, {transform_indices = @transform_3, window_bounds = array<i64: 1>}, {transform_indices = @transform_4, window_bounds = array<i64: 4, 128>}]} {
    %c0 = arith.constant 0 : index
    %c0_0 = arith.constant 0 : index
    %0 = vector.load %arg1[%c0, %c0_0] : memref<4x256xf32, #tpu.memory_space<vmem>>, vector<4x256xf32>
    %c0_1 = arith.constant 0 : index
    %c0_2 = arith.constant 0 : index
    %1 = vector.load %arg2[%c0_1, %c0_2] : memref<256x4xf32, #tpu.memory_space<vmem>>, vector<256x4xf32>
    %cst = arith.constant dense<0.000000e+00> : vector<4x4xf32>
    %2 = tpu.matmul %0, %1, %cst {dimension_numbers = #tpu.dot_dimension_numbers<[1], [0], [0], [1], [0, 0, 1, 1], [], []>} : vector<4x256xf32>, vector<256x4xf32>, vector<4x4xf32> -> vector<4x4xf32>
    %c0_3 = arith.constant 0 : index
    %3 = memref.load %arg4[%c0_3] : memref<1xf32, #tpu.memory_space<smem>>
    %4 = vector.broadcast %3 : f32 to vector<4x4xf32>
    %5 = arith.addf %2, %4 : vector<4x4xf32>
    %6 = arith.negf %5 : vector<4x4xf32>
    %7 = math.exp %6 : vector<4x4xf32>
    %cst_4 = arith.constant 1.000000e+00 : f32
    %8 = vector.broadcast %cst_4 : f32 to vector<4x4xf32>
    %9 = arith.addf %8, %7 : vector<4x4xf32>
    %10 = arith.divf %8, %9 : vector<4x4xf32>
    %c0_5 = arith.constant 0 : index
    %c0_6 = arith.constant 0 : index
    %11 = vector.load %arg3[%c0_5, %c0_6] : memref<4x128xf32, #tpu.memory_space<vmem>>, vector<4x128xf32>
    %cst_7 = arith.constant dense<0.000000e+00> : vector<4x128xf32>
    %12 = tpu.matmul %10, %11, %cst_7 {dimension_numbers = #tpu.dot_dimension_numbers<[1], [0], [0], [1], [0, 0, 1, 1], [], []>} : vector<4x4xf32>, vector<4x128xf32>, vector<4x128xf32> -> vector<4x128xf32>
    %13 = vector.extract_strided_slice %0 {offsets = [0, 0], sizes = [4, 32], strides = [1, 1]} : vector<4x256xf32> to vector<4x32xf32>
    %14 = vector.extract_strided_slice %0 {offsets = [0, 64], sizes = [4, 32], strides = [1, 1]} : vector<4x256xf32> to vector<4x32xf32>
    %15 = vector.extract_strided_slice %0 {offsets = [0, 128], sizes = [4, 32], strides = [1, 1]} : vector<4x256xf32> to vector<4x32xf32>
    %16 = vector.extract_strided_slice %0 {offsets = [0, 192], sizes = [4, 32], strides = [1, 1]} : vector<4x256xf32> to vector<4x32xf32>
    %17 = tpu.concatenate %13, %14, %15, %16 in 1 : vector<4x32xf32>, vector<4x32xf32>, vector<4x32xf32>, vector<4x32xf32> -> vector<4x128xf32>
    %18 = vector.extract_strided_slice %0 {offsets = [0, 32], sizes = [4, 32], strides = [1, 1]} : vector<4x256xf32> to vector<4x32xf32>
    %19 = vector.extract_strided_slice %0 {offsets = [0, 96], sizes = [4, 32], strides = [1, 1]} : vector<4x256xf32> to vector<4x32xf32>
    %20 = vector.extract_strided_slice %0 {offsets = [0, 160], sizes = [4, 32], strides = [1, 1]} : vector<4x256xf32> to vector<4x32xf32>
    %21 = vector.extract_strided_slice %0 {offsets = [0, 224], sizes = [4, 32], strides = [1, 1]} : vector<4x256xf32> to vector<4x32xf32>
    %22 = tpu.concatenate %18, %19, %20, %21 in 1 : vector<4x32xf32>, vector<4x32xf32>, vector<4x32xf32>, vector<4x32xf32> -> vector<4x128xf32>
    %23 = arith.subf %17, %22 : vector<4x128xf32>
    %24 = arith.mulf %12, %23 : vector<4x128xf32>
    %25 = arith.addf %22, %24 : vector<4x128xf32>
    %c0_8 = arith.constant 0 : index
    %c0_9 = arith.constant 0 : index
    %26 = vector.load %arg5[%c0_8, %c0_9] : memref<4x128xf32, #tpu.memory_space<vmem>>, vector<4x128xf32>
    tpu.vector_store %arg5[%c0_8, %c0_9], %25 {strides = array<i32>} : memref<4x128xf32, #tpu.memory_space<vmem>>, vector<4x128xf32>,
    return
  }
  func.func @transform_0(%arg0: i32) -> (i32, i32) {
    %c0_i32 = arith.constant 0 : i32
    %c0_i32_0 = arith.constant 0 : i32
    return %arg0, %c0_i32 : i32, i32
  }
  func.func @transform_1(%arg0: i32) -> (i32, i32) {
    %c0_i32 = arith.constant 0 : i32
    %c0_i32_0 = arith.constant 0 : i32
    %c0_i32_1 = arith.constant 0 : i32
    return %c0_i32, %c0_i32_0 : i32, i32
  }
  func.func @transform_2(%arg0: i32) -> (i32, i32) {
    %c0_i32 = arith.constant 0 : i32
    %c0_i32_0 = arith.constant 0 : i32
    %c0_i32_1 = arith.constant 0 : i32
    return %c0_i32, %c0_i32_0 : i32, i32
  }
  func.func @transform_3(%arg0: i32) -> i32 {
    %c0_i32 = arith.constant 0 : i32
    %c0_i32_0 = arith.constant 0 : i32
    return %c0_i32 : i32
  }
  func.func @transform_4(%arg0: i32) -> (i32, i32) {
    %c0_i32 = arith.constant 0 : i32
    %c0_i32_0 = arith.constant 0 : i32
    return %arg0, %c0_i32 : i32, i32
  }
}

</mosaic_0001>

<llo_original>
// kernel: tpu_custom_call.1
$region0: #{tpu_custom_call.1}
  #allocation0 [shape = 'u32[]', space=smem, size = 0x4, offset = 0x4, fixed_abs, tag = 'smem constant byte address 0x4 - core index']
  #allocation1 [shape = 'u32[144,128]{1,0:T(1,128)}', space=vmem, size = 0x12000, scoped, tag = 'internal scratch']
  #allocation2 [shape = 'f32[1]{0:T(128)S(6)}', space=smem, size = 0x200, scoped, tag = 'scoped memory for tpu_custom_call.1']
  %s0 = inlined_call_operand.vmem [shape: f32[4,256], index: 0, kind: input, shape index: {}]
  %s1 = inlined_call_operand.vmem [shape: f32[256,4], index: 1, kind: input, shape index: {}]
  %s2 = inlined_call_operand.vmem [shape: f32[4,128], index: 2, kind: input, shape index: {}]
  %s3 = inlined_call_operand.<no memory space> [shape: f32[1], index: 3, kind: input, shape index: {}]
  %s4 = inlined_call_operand.hbm [shape: f32[4,128], index: 4, kind: output, shape index: {}]
  %s5 = sld [smem:[#allocation0]]
  $region26: #{tpu_custom_call.1} parent=0
    _
  %s7 = ssub.s32 1, %s5
  %s8 = scalar_select 0, %s7, %s5
  %9 = sst [smem:[#allocation2]] %s3
  $region1: #{tpu_custom_call.1} parent=0
    #allocation3 [shape = 'u8[2048]{0}', space=vmem, size = 0x800, scoped, tag = 'output window, operand 0, single buffered']
    #allocation4 [shape = 's32[1]{0}', space=sflag, size = 0x4, scoped, tag = 'scoped memory for tpu_custom_call.1']
    %10 = vsyncpa [#allocation4], 0
    // Predicated region
    $region2: #{tpu_custom_call.1} parent=1 // pred_check
      _
    $region3: #{tpu_custom_call.1} parent=1 // pred_check_branch
      %12 = sbr.rel (0) target = $region5
    $region4: #{tpu_custom_call.1} parent=1 // pred_region
      _
    $region5: #{tpu_custom_call.1} parent=1 // pred_fallthru
      _
    // Predicated region
    $region6: #{tpu_custom_call.1} parent=1 // pred_check
      _
    $region7: #{tpu_custom_call.1} parent=1 // pred_check_branch
      %14 = sbr.rel (0) target = $region9
    $region8: #{tpu_custom_call.1} parent=1 // pred_region
      _
    $region9: #{tpu_custom_call.1} parent=1 // pred_fallthru
      _
    // Predicated region
    $region10: #{tpu_custom_call.1} parent=1 // pred_check
      _
    $region11: #{tpu_custom_call.1} parent=1 // pred_check_branch
      %16 = sbr.rel (0) target = $region13
    $region12: #{tpu_custom_call.1} parent=1 // pred_region
      _
    $region13: #{tpu_custom_call.1} parent=1 // pred_fallthru
      _
    // Predicated region
    $region14: #{tpu_custom_call.1} parent=1 // pred_check
      _
    $region15: #{tpu_custom_call.1} parent=1 // pred_check_branch
      %18 = sbr.rel (0) target = $region17
    $region16: #{tpu_custom_call.1} parent=1 // pred_region
      _
    $region17: #{tpu_custom_call.1} parent=1 // pred_fallthru
      _
    %v19 = vld [vmem:[%s0] sm:$0xff]
    %v20 = vld [vmem:[%s1] sm:$0xff]
    %v21 = vld [vmem:[%s1 + $0x8] sm:$0xff]
    %v22 = vld [vmem:[%s1 + $0x10] sm:$0xff]
    %v23 = vld [vmem:[%s1 + $0x18] sm:$0xff]
    %v24 = vld [vmem:[%s1 + $0x20] sm:$0xff]
    %v25 = vld [vmem:[%s1 + $0x28] sm:$0xff]
    %v26 = vld [vmem:[%s1 + $0x30] sm:$0xff]
    %v27 = vld [vmem:[%s1 + $0x38] sm:$0xff]
    %v28 = vld [vmem:[%s1 + $0x40] sm:$0xff]
    %v29 = vld [vmem:[%s1 + $0x48] sm:$0xff]
    %v30 = vld [vmem:[%s1 + $0x50] sm:$0xff]
    %v31 = vld [vmem:[%s1 + $0x58] sm:$0xff]
    %v32 = vld [vmem:[%s1 + $0x60] sm:$0xff]
    %v33 = vld [vmem:[%s1 + $0x68] sm:$0xff]
    %v34 = vld [vmem:[%s1 + $0x70] sm:$0xff]
    %v35 = vld [vmem:[%s1 + $0x78] sm:$0xff]
    %v36 = vld [vmem:[%s1 + $0x80] sm:$0xff]
    %v37 = vld [vmem:[%s1 + $0x88] sm:$0xff]
    %v38 = vld [vmem:[%s1 + $0x90] sm:$0xff]
    %v39 = vld [vmem:[%s1 + $0x98] sm:$0xff]
    %v40 = vld [vmem:[%s1 + $0xa0] sm:$0xff]
    %v41 = vld [vmem:[%s1 + $0xa8] sm:$0xff]
    %v42 = vld [vmem:[%s1 + $0xb0] sm:$0xff]
    %v43 = vld [vmem:[%s1 + $0xb8] sm:$0xff]
    %v44 = vld [vmem:[%s1 + $0xc0] sm:$0xff]
    %v45 = vld [vmem:[%s1 + $0xc8] sm:$0xff]
    %v46 = vld [vmem:[%s1 + $0xd0] sm:$0xff]
    %v47 = vld [vmem:[%s1 + $0xd8] sm:$0xff]
    %v48 = vld [vmem:[%s1 + $0xe0] sm:$0xff]
    %v49 = vld [vmem:[%s1 + $0xe8] sm:$0xff]
    %v50 = vld [vmem:[%s1 + $0xf0] sm:$0xff]
    %v51 = vld [vmem:[%s1 + $0xf8] sm:$0xff]
    %s52 = sld [smem:[#allocation2]]
    %v53 = vstv %s52
    %v55 = vcombine.high %v19, %v19
    %57 = vmatprep.subr.mxu0 0.0
    %58 = vmatpush1.msra.mxu0 %v35
    %59 = vmatprep.subr.mxu0 0.0
    %60 = vmatpush1.msra.mxu0 %v34
    %61 = vmatprep.subr.mxu0 0.0
    %62 = vmatpush1.msra.mxu0 %v33
    %63 = vmatprep.subr.mxu0 0.0
    %64 = vmatpush1.msra.mxu0 %v32
    %65 = vmatprep.subr.mxu0 0.0
    %66 = vmatpush1.msra.mxu0 %v31
    %67 = vmatprep.subr.mxu0 0.0
    %68 = vmatpush1.msra.mxu0 %v30
    %69 = vmatprep.subr.mxu0 0.0
    %70 = vmatpush1.msra.mxu0 %v29
    %71 = vmatprep.subr.mxu0 0.0
    %72 = vmatpush1.msra.mxu0 %v28
    %73 = vmatprep.subr.mxu0 0.0
    %74 = vmatpush1.msra.mxu0 %v27
    %75 = vmatprep.subr.mxu0 0.0
    %76 = vmatpush1.msra.mxu0 %v26
    %77 = vmatprep.subr.mxu0 0.0
    %78 = vmatpush1.msra.mxu0 %v25
    %79 = vmatprep.subr.mxu0 0.0
    %80 = vmatpush1.msra.mxu0 %v24
    %81 = vmatprep.subr.mxu0 0.0
    %82 = vmatpush1.msra.mxu0 %v23
    %83 = vmatprep.subr.mxu0 0.0
    %84 = vmatpush1.msra.mxu0 %v22
    %85 = vmatprep.subr.mxu0 0.0
    %86 = vmatpush1.msra.mxu0 %v21
    %87 = vmatprep.subr.mxu0 0.0
    %88 = vmatpush1.msra.mxu0 %v20
    %89 = vmatprep.subr.mxu0 0.0
    %90 = vmatpush2.msra.mxu0 %v51
    %91 = vmatprep.subr.mxu0 0.0
    %92 = vmatpush2.msra.mxu0 %v50
    %93 = vmatprep.subr.mxu0 0.0
    %94 = vmatpush2.msra.mxu0 %v49
    %95 = vmatprep.subr.mxu0 0.0
    %96 = vmatpush2.msra.mxu0 %v48
    %97 = vmatprep.subr.mxu0 0.0
    %98 = vmatpush2.msra.mxu0 %v47
    %99 = vmatprep.subr.mxu0 0.0
    %100 = vmatpush2.msra.mxu0 %v46
    %101 = vmatprep.subr.mxu0 0.0
    %102 = vmatpush2.msra.mxu0 %v45
    %103 = vmatprep.subr.mxu0 0.0
    %104 = vmatpush2.msra.mxu0 %v44
    %105 = vmatprep.subr.mxu0 0.0
    %106 = vmatpush2.msra.mxu0 %v43
    %107 = vmatprep.subr.mxu0 0.0
    %108 = vmatpush2.msra.mxu0 %v42
    %109 = vmatprep.subr.mxu0 0.0
    %110 = vmatpush2.msra.mxu0 %v41
    %111 = vmatprep.subr.mxu0 0.0
    %112 = vmatpush2.msra.mxu0 %v40
    %113 = vmatprep.subr.mxu0 0.0
    %114 = vmatpush2.msra.mxu0 %v39
    %115 = vmatprep.subr.mxu0 0.0
    %116 = vmatpush2.msra.mxu0 %v38
    %117 = vmatprep.subr.mxu0 0.0
    %118 = vmatpush2.msra.mxu0 %v37
    %119 = vmatprep.subr.mxu0 0.0
    %120 = vmatpush2.msra.mxu0 %v36
    %121 = vmatprep.mubr.f32.mxu0 %v55
    %122 = vmatmul.mubr.f32.gmra.mxu0 %v19
    %v123 = vpop.f32.mrf.mxu0
    %v124 = vadd.f32 %v53, %v123
    %v125 = vpop.f32.mrf.mxu0
    %126 = vdwg.mxu0
    %v127 = vxor.u32 %v124, 2147483648
    %v128 = vmul.f32 %v127, 1.442695
    %v129 = vpow.pop %v128
    %v130 = vadd.f32 %v129, 1.0
    %v131 = vrcp.pop %v130
    %v132 = vmul.f32 1.0, %v131
    %v133 = vld [vmem:[%s2] sm:$0xf]
    %vm134 = vcmask 31744
    %v136 = vsel %vm134, %v132, 0
    %vm138 = vcmask 1043456
    %v140 = vsel %vm138, %v133, 0
    %142 = vmatprep.subr.mxu0 0.0
    %143 = vmatpush1.msra.mxu0 0.0
    %144 = vmatprep.subr.mxu0 0.0
    %145 = vmatpush1.msra.mxu0 0.0
    %146 = vmatprep.subr.mxu0 0.0
    %147 = vmatpush1.msra.mxu0 0.0
    %148 = vmatprep.subr.mxu0 0.0
    %149 = vmatpush1.msra.mxu0 0.0
    %150 = vmatprep.subr.mxu0 0.0
    %151 = vmatpush1.msra.mxu0 0.0
    %152 = vmatprep.subr.mxu0 0.0
    %153 = vmatpush1.msra.mxu0 0.0
    %154 = vmatprep.subr.mxu0 0.0
    %155 = vmatpush1.msra.mxu0 0.0
    %156 = vmatprep.subr.mxu0 0.0
    %157 = vmatpush1.msra.mxu0 0.0
    %158 = vmatprep.subr.mxu0 0.0
    %159 = vmatpush1.msra.mxu0 0.0
    %160 = vmatprep.subr.mxu0 0.0
    %161 = vmatpush1.msra.mxu0 0.0
    %162 = vmatprep.subr.mxu0 0.0
    %163 = vmatpush1.msra.mxu0 0.0
    %164 = vmatprep.subr.mxu0 0.0
    %165 = vmatpush1.msra.mxu0 0.0
    %166 = vmatprep.subr.mxu0 0.0
    %167 = vmatpush1.msra.mxu0 0.0
    %168 = vmatprep.subr.mxu0 0.0
    %169 = vmatpush1.msra.mxu0 0.0
    %170 = vmatprep.subr.mxu0 0.0
    %171 = vmatpush1.msra.mxu0 0.0
    %172 = vmatprep.subr.mxu0 0.0
    %173 = vmatpush1.msra.mxu0 %v140
    %174 = vmatprep.subr.mxu0 0.0
    %175 = vmatpush2.msra.mxu0 0.0
    %176 = vmatprep.subr.mxu0 0.0
    %177 = vmatpush2.msra.mxu0 0.0
    %178 = vmatprep.subr.mxu0 0.0
    %179 = vmatpush2.msra.mxu0 0.0
    %180 = vmatprep.subr.mxu0 0.0
    %181 = vmatpush2.msra.mxu0 0.0
    %182 = vmatprep.subr.mxu0 0.0
    %183 = vmatpush2.msra.mxu0 0.0
    %184 = vmatprep.subr.mxu0 0.0
    %185 = vmatpush2.msra.mxu0 0.0
    %186 = vmatprep.subr.mxu0 0.0
    %187 = vmatpush2.msra.mxu0 0.0
    %188 = vmatprep.subr.mxu0 0.0
    %189 = vmatpush2.msra.mxu0 0.0
    %190 = vmatprep.subr.mxu0 0.0
    %191 = vmatpush2.msra.mxu0 0.0
    %192 = vmatprep.subr.mxu0 0.0
    %193 = vmatpush2.msra.mxu0 0.0
    %194 = vmatprep.subr.mxu0 0.0
    %195 = vmatpush2.msra.mxu0 0.0
    %196 = vmatprep.subr.mxu0 0.0
    %197 = vmatpush2.msra.mxu0 0.0
    %198 = vmatprep.subr.mxu0 0.0
    %199 = vmatpush2.msra.mxu0 0.0
    %200 = vmatprep.subr.mxu0 0.0
    %201 = vmatpush2.msra.mxu0 0.0
    %202 = vmatprep.subr.mxu0 0.0
    %203 = vmatpush2.msra.mxu0 0.0
    %204 = vmatprep.subr.mxu0 0.0
    %205 = vmatpush2.msra.mxu0 0.0
    %206 = vmatprep.mubr.f32.mxu0 0.0
    %207 = vmatmul.mubr.f32.gmra.mxu0 %v136
    %v208 = vpop.f32.mrf.mxu0
    %v209 = vadd.f32 0.0, %v208
    %v210 = vpop.f32.mrf.mxu0
    %211 = vdwg.mxu0
    %212 = vrot.lane.b32.xlu0 %v19, 96
    %v213 = vpop.permute.xlu0 %212
    %215 = vrot.lane.b32.xlu0 %v55, 64
    %v216 = vpop.permute.xlu0 %215
    %218 = vrot.lane.b32.xlu0 %v55, 32
    %v219 = vpop.permute.xlu0 %218
    %vm221 = vcmask 261120
    %v222 = vsel %vm221, %v19, %v213
    %vm223 = vcmask 523264
    %v224 = vsel %vm223, %v222, %v216
    %vm225 = vcmask 785408
    %v226 = vsel %vm225, %v224, %v219
    %227 = vrot.lane.b32.xlu0 %v19, 64
    %v228 = vpop.permute.xlu0 %227
    %v230 = vsel %vm221, %v213, %v228
    %v231 = vsel %vm223, %v230, %v219
    %v232 = vsel %vm225, %v231, %v55
    %v233 = vsub.f32 %v226, %v232
    %v234 = vmul.f32 %v209, %v233
    %v235 = vadd.f32 %v232, %v234
    %236 = vst [vmem:[#allocation3] sm:$0xf] %v235
    // Predicated region
    $region18: #{tpu_custom_call.1} parent=1 // pred_check
      _
    $region19: #{tpu_custom_call.1} parent=1 // pred_check_branch
      %238 = sbr.rel (0) target = $region21
    $region20: #{tpu_custom_call.1} parent=1 // pred_region
      %s240 = ssub.s32 64, 64
      %241 = vsyncadd [#allocation4], %s240
      %s243 = sshll.u32 [#allocation3], 4
      %s244 = int_to_ptr.vmem [resolvable:$true] %s243
      %246 = dma.vmem_to_hbm [thread:$0]  %s244, 64, %s4, [#allocation4]
    $region21: #{tpu_custom_call.1} parent=1 // pred_fallthru
      _
    // Predicated region
    $region22: #{tpu_custom_call.1} parent=1 // pred_check
      _
    $region23: #{tpu_custom_call.1} parent=1 // pred_check_branch
      %248 = sbr.rel (0) target = $region25
    $region24: #{tpu_custom_call.1} parent=1 // pred_region
      %249 = dma.done [#allocation4], 64
    $region25: #{tpu_custom_call.1} parent=1 // pred_fallthru
      _
    %250 = vsyncpa [#allocation4], 1

</llo_original>
